<compile_context>
chip_gen: v6e
topology: v6e:2x2x1
jax: 0.10.0
libtpu: 0.0.40
codegen_flags: <defaults>
</compile_context>

<pallas_src>
import jax
import jax.numpy as jnp
from jax.experimental import pallas as pl
from jax.experimental.pallas import tpu as pltpu


def lstm_seq_kernel(x2d_ref, wih_ref, whh_ref, b_ref, h0_ref, c0_ref,
                    y_ref, state_ref):
    """Whole-sequence LSTM in a single kernel invocation.

    x2d_ref:  (T*B, I)   flattened inputs (f32; cast to bf16 at the MXU)
    wih_ref:  (I, 4H)    W_ih^T, bf16, i/f/o gate columns pre-scaled by 0.5
    whh_ref:  (H, 4H)    W_hh^T, bf16, i/f/o gate columns pre-scaled by 0.5
    b_ref:    (1, 4H)    (b_ih + b_hh) * gate_scale, f32
    h0/c0:    (B, H)     initial state (f32)
    y_ref:    (T, B, H)  stacked hidden states
    state_ref:(2, B, H)  final (h, c), f32
    """
    T, B, H = y_ref.shape

    # ---- phase 0: input projection for ALL timesteps in one MXU pass -------
    gx = (jnp.dot(x2d_ref[...].astype(jnp.bfloat16), wih_ref[...],
                  preferred_element_type=jnp.float32)
          + b_ref[...])                                    # (T*B, 4H) f32

    whh = whh_ref[...]                                     # (H, 4H) bf16, resident
    h = h0_ref[...].astype(jnp.float32)                    # (B, H) f32
    c = c0_ref[...].astype(jnp.float32)                    # (B, H) f32
    h_mx = h.astype(jnp.bfloat16)                          # MXU operand copy

    # Hoisted lane-wise affine constants for the single-tanh gate activation.
    # Sigmoid lanes (i/f/o): act = 0.5*tanh(x/2) + 0.5 (the /2 is already folded
    # into the weights/bias); tanh lane (g): act = tanh(x).
    # (B, 4H) = (8, 128) -> exactly one f32 vreg each; built once outside the loop
    # (JAX does not CSE broadcast_in_dim across iterations).
    lane = jax.lax.broadcasted_iota(jnp.int32, (B, 4 * H), 1)
    is_g = (lane >= 2 * H) & (lane < 3 * H)
    post_scale = jnp.where(is_g, 1.0, 0.5).astype(jnp.float32)
    post_off = jnp.where(is_g, 0.0, 0.5).astype(jnp.float32)

    # ---- phase 1: serial recurrence, fully unrolled (T static & small) -----
    hs = []
    for t in range(T):
        gates = gx[t * B:(t + 1) * B, :] + jnp.dot(
            h_mx, whh, preferred_element_type=jnp.float32)     # (B, 4H) f32

        # ONE full-width transcendental per step, then a cheap VPU blend.
        act = jnp.tanh(gates) * post_scale + post_off          # (B, 4H)

        i_g = act[:, 0 * H:1 * H]
        f_g = act[:, 1 * H:2 * H]
        g_g = act[:, 2 * H:3 * H]
        o_g = act[:, 3 * H:4 * H]

        c = f_g * c + i_g * g_g
        h = o_g * jnp.tanh(c)
        h_mx = h.astype(jnp.bfloat16)
        hs.append(h)

    # ---- epilogue: coalesced writeback, off the serial chain ----------------
    y_ref[...] = jnp.stack(hs).astype(y_ref.dtype)
    state_ref[0] = h.astype(state_ref.dtype)
    state_ref[1] = c.astype(state_ref.dtype)


def prepare_lstm_params(w_ih, w_hh, b_ih, b_hh):
    """One-time parameter prep (module init time, NOT per forward call).

    - Transposes weights so the 4H gate axis is lane-dense.
    - Folds the 0.5 pre-scale for the sigmoid gates (i, f, o in PyTorch order
      i, f, g, o) into the weights and bias, enabling the single-tanh trick
      sigmoid(x) = 0.5*tanh(x/2) + 0.5 in the kernel.
    - Casts matmul operands to bf16 (MXU); bias stays f32.
    """
    four_h = w_ih.shape[0]
    H = four_h // 4
    gate_scale = jnp.concatenate([
        jnp.full((2 * H,), 0.5, jnp.float32),   # i, f  -> sigmoid lanes
        jnp.ones((H,), jnp.float32),            # g     -> tanh lane
        jnp.full((H,), 0.5, jnp.float32),       # o     -> sigmoid lane
    ])
    wih_t = (w_ih.astype(jnp.float32).T * gate_scale[None, :]).astype(jnp.bfloat16)
    whh_t = (w_hh.astype(jnp.float32).T * gate_scale[None, :]).astype(jnp.bfloat16)
    b = ((b_ih + b_hh).astype(jnp.float32) * gate_scale)[None, :]   # (1, 4H) f32
    return wih_t, whh_t, b


def lstm_detach_layer_forward(x, prev_state, prepped_params):
    """x: (T, B, I); prev_state = (h0, c0) each (B, H); prepped_params from
    prepare_lstm_params().  Returns (stacked_h (T,B,H), (hT, cT))."""
    wih_t, whh_t, b = prepped_params
    T, B, _ = x.shape
    h0, c0 = prev_state
    H = h0.shape[-1]

    x2d = x.reshape(T * B, x.shape[-1])   # free row-major reshape

    in_specs = [pl.BlockSpec(memory_space=pltpu.MemorySpace.VMEM)
                for _ in range(6)]
    out_specs = (pl.BlockSpec(memory_space=pltpu.MemorySpace.VMEM),
                 pl.BlockSpec(memory_space=pltpu.MemorySpace.VMEM))

    y, state = pl.pallas_call(
        lstm_seq_kernel,
        out_shape=(
            jax.ShapeDtypeStruct((T, B, H), x.dtype),    # stacked hidden states
            jax.ShapeDtypeStruct((2, B, H), h0.dtype),   # final (h, c), kept f32
        ),
        in_specs=in_specs,
        out_specs=out_specs,
    )(x2d, wih_t, whh_t, b, h0, c0)

    return y, (state[0], state[1])


def _lstm_reference(x, prev_state, w_ih, w_hh, b_ih, b_hh):
    """Pure-JAX f32 reference matching torch.nn.LSTMCell forward semantics."""
    H = prev_state[0].shape[-1]

    def step(carry, xt):
        h, c = carry
        gates = xt @ w_ih.T + b_ih + h @ w_hh.T + b_hh
        i = jax.nn.sigmoid(gates[:, 0 * H:1 * H])
        f = jax.nn.sigmoid(gates[:, 1 * H:2 * H])
        g = jnp.tanh(gates[:, 2 * H:3 * H])
        o = jax.nn.sigmoid(gates[:, 3 * H:4 * H])
        c_new = f * c + i * g
        h_new = o * jnp.tanh(c_new)
        return (h_new, c_new), h_new

    (hT, cT), ys = jax.lax.scan(step, prev_state, x)
    return ys, (hT, cT)


if __name__ == "__main__":
    # Small shapes consistent with the module: seq=8, batch=8, in=16, hidden=32.
    T, B, I, H = 8, 8, 16, 32
    key = jax.random.PRNGKey(0)
    kx, kh, kc, k1, k2, k3, k4 = jax.random.split(key, 7)

    x = jax.random.normal(kx, (T, B, I), jnp.float32)
    h0 = jnp.zeros((B, H), jnp.float32)   # init_hidden()
    c0 = jnp.zeros((B, H), jnp.float32)

    # Deterministic parameter init mimicking nn.LSTMCell: U(-1/sqrt(H), 1/sqrt(H)).
    bound = 1.0 / jnp.sqrt(jnp.float32(H))
    w_ih = jax.random.uniform(k1, (4 * H, I), jnp.float32, -bound, bound)
    w_hh = jax.random.uniform(k2, (4 * H, H), jnp.float32, -bound, bound)
    b_ih = jax.random.uniform(k3, (4 * H,), jnp.float32, -bound, bound)
    b_hh = jax.random.uniform(k4, (4 * H,), jnp.float32, -bound, bound)

    # One-time prep (hoisted out of the per-call path).
    params = prepare_lstm_params(w_ih, w_hh, b_ih, b_hh)

    fwd = jax.jit(lstm_detach_layer_forward)
    y, (hT, cT) = fwd(x, (h0, c0), params)
    jax.block_until_ready((y, hT, cT))

    y_ref, (hT_ref, cT_ref) = _lstm_reference(x, (h0, c0), w_ih, w_hh, b_ih, b_hh)

    # bf16 MXU operands (deliberate perf tradeoff) => relaxed tolerance vs the
    # f32 reference; a structural bug (e.g. gate-order mixup) would still blow
    # far past these bounds.
    assert jnp.allclose(y, y_ref, atol=3e-2, rtol=3e-2)
    assert jnp.allclose(hT, hT_ref, atol=3e-2, rtol=3e-2)
    assert jnp.allclose(cT, cT_ref, atol=3e-2, rtol=3e-2)

    print("KERNEL_OK")
</pallas_src>

<mosaic_0001>
module attributes {stable_mosaic.version = 11 : i64} {
  func.func @lstm_seq_kernel(%arg0: memref<64x16xf32, #tpu.memory_space<vmem>>, %arg1: memref<16x128xbf16, #tpu.memory_space<vmem>>, %arg2: memref<32x128xbf16, #tpu.memory_space<vmem>>, %arg3: memref<1x128xf32, #tpu.memory_space<vmem>>, %arg4: memref<8x32xf32, #tpu.memory_space<vmem>>, %arg5: memref<8x32xf32, #tpu.memory_space<vmem>>, %arg6: memref<8x8x32xf32, #tpu.memory_space<vmem>>, %arg7: memref<2x8x32xf32, #tpu.memory_space<vmem>>) attributes {dimension_semantics = [], scalar_prefetch = 0 : i64, scratch_operands = 0 : i64, tpu.core_type = #tpu.core_type<tc>} {
    %c0 = arith.constant 0 : index
    %c0_0 = arith.constant 0 : index
    %0 = vector.load %arg0[%c0, %c0_0] : memref<64x16xf32, #tpu.memory_space<vmem>>, vector<64x16xf32>
    %1 = arith.truncf %0 : vector<64x16xf32> to vector<64x16xbf16>
    %c0_1 = arith.constant 0 : index
    %c0_2 = arith.constant 0 : index
    %2 = vector.load %arg1[%c0_1, %c0_2] : memref<16x128xbf16, #tpu.memory_space<vmem>>, vector<16x128xbf16>
    %cst = arith.constant dense<0.000000e+00> : vector<64x128xf32>
    %3 = tpu.matmul %1, %2, %cst {dimension_numbers = #tpu.dot_dimension_numbers<[1], [0], [0], [1], [0, 0, 1, 1], [], []>} : vector<64x16xbf16>, vector<16x128xbf16>, vector<64x128xf32> -> vector<64x128xf32>
    %c0_3 = arith.constant 0 : index
    %c0_4 = arith.constant 0 : index
    %4 = vector.load %arg3[%c0_3, %c0_4] : memref<1x128xf32, #tpu.memory_space<vmem>>, vector<1x128xf32>
    %5 = vector.broadcast %4 : vector<1x128xf32> to vector<64x128xf32>
    %6 = arith.addf %3, %5 : vector<64x128xf32>
    %c0_5 = arith.constant 0 : index
    %c0_6 = arith.constant 0 : index
    %7 = vector.load %arg2[%c0_5, %c0_6] : memref<32x128xbf16, #tpu.memory_space<vmem>>, vector<32x128xbf16>
    %c0_7 = arith.constant 0 : index
    %c0_8 = arith.constant 0 : index
    %8 = vector.load %arg4[%c0_7, %c0_8] : memref<8x32xf32, #tpu.memory_space<vmem>>, vector<8x32xf32>
    %c0_9 = arith.constant 0 : index
    %c0_10 = arith.constant 0 : index
    %9 = vector.load %arg5[%c0_9, %c0_10] : memref<8x32xf32, #tpu.memory_space<vmem>>, vector<8x32xf32>
    %10 = arith.truncf %8 : vector<8x32xf32> to vector<8x32xbf16>
    %11 = tpu.iota {dimensions = array<i32: 1>} : vector<8x128xi32>
    %c64_i32 = arith.constant 64 : i32
    %12 = vector.broadcast %c64_i32 : i32 to vector<8x128xi32>
    %13 = arith.cmpi sge, %11, %12 : vector<8x128xi32>
    %c96_i32 = arith.constant 96 : i32
    %14 = vector.broadcast %c96_i32 : i32 to vector<8x128xi32>
    %15 = arith.cmpi slt, %11, %14 : vector<8x128xi32>
    %16 = arith.andi %13, %15 : vector<8x128xi1>
    %cst_11 = arith.constant 1.000000e+00 : f32
    %cst_12 = arith.constant 5.000000e-01 : f32
    %17 = vector.broadcast %cst_11 : f32 to vector<8x128xf32>
    %18 = vector.broadcast %cst_12 : f32 to vector<8x128xf32>
    %19 = arith.select %16, %17, %18 : vector<8x128xi1>, vector<8x128xf32>
    %cst_13 = arith.constant 0.000000e+00 : f32
    %cst_14 = arith.constant 5.000000e-01 : f32
    %20 = vector.broadcast %cst_13 : f32 to vector<8x128xf32>
    %21 = vector.broadcast %cst_14 : f32 to vector<8x128xf32>
    %22 = arith.select %16, %20, %21 : vector<8x128xi1>, vector<8x128xf32>
    %23 = vector.extract_strided_slice %6 {offsets = [0, 0], sizes = [8, 128], strides = [1, 1]} : vector<64x128xf32> to vector<8x128xf32>
    %cst_15 = arith.constant dense<0.000000e+00> : vector<8x128xf32>
    %24 = tpu.matmul %10, %7, %cst_15 {dimension_numbers = #tpu.dot_dimension_numbers<[1], [0], [0], [1], [0, 0, 1, 1], [], []>} : vector<8x32xbf16>, vector<32x128xbf16>, vector<8x128xf32> -> vector<8x128xf32>
    %25 = arith.addf %23, %24 : vector<8x128xf32>
    %26 = math.tanh %25 : vector<8x128xf32>
    %27 = arith.mulf %26, %19 : vector<8x128xf32>
    %28 = arith.addf %27, %22 : vector<8x128xf32>
    %29 = vector.extract_strided_slice %28 {offsets = [0, 0], sizes = [8, 32], strides = [1, 1]} : vector<8x128xf32> to vector<8x32xf32>
    %30 = vector.extract_strided_slice %28 {offsets = [0, 32], sizes = [8, 32], strides = [1, 1]} : vector<8x128xf32> to vector<8x32xf32>
    %31 = vector.extract_strided_slice %28 {offsets = [0, 64], sizes = [8, 32], strides = [1, 1]} : vector<8x128xf32> to vector<8x32xf32>
    %32 = vector.extract_strided_slice %28 {offsets = [0, 96], sizes = [8, 32], strides = [1, 1]} : vector<8x128xf32> to vector<8x32xf32>
    %33 = arith.mulf %30, %9 : vector<8x32xf32>
    %34 = arith.mulf %29, %31 : vector<8x32xf32>
    %35 = arith.addf %33, %34 : vector<8x32xf32>
    %36 = math.tanh %35 : vector<8x32xf32>
    %37 = arith.mulf %32, %36 : vector<8x32xf32>
    %38 = arith.truncf %37 : vector<8x32xf32> to vector<8x32xbf16>
    %39 = vector.extract_strided_slice %6 {offsets = [8, 0], sizes = [8, 128], strides = [1, 1]} : vector<64x128xf32> to vector<8x128xf32>
    %cst_16 = arith.constant dense<0.000000e+00> : vector<8x128xf32>
    %40 = tpu.matmul %38, %7, %cst_16 {dimension_numbers = #tpu.dot_dimension_numbers<[1], [0], [0], [1], [0, 0, 1, 1], [], []>} : vector<8x32xbf16>, vector<32x128xbf16>, vector<8x128xf32> -> vector<8x128xf32>
    %41 = arith.addf %39, %40 : vector<8x128xf32>
    %42 = math.tanh %41 : vector<8x128xf32>
    %43 = arith.mulf %42, %19 : vector<8x128xf32>
    %44 = arith.addf %43, %22 : vector<8x128xf32>
    %45 = vector.extract_strided_slice %44 {offsets = [0, 0], sizes = [8, 32], strides = [1, 1]} : vector<8x128xf32> to vector<8x32xf32>
    %46 = vector.extract_strided_slice %44 {offsets = [0, 32], sizes = [8, 32], strides = [1, 1]} : vector<8x128xf32> to vector<8x32xf32>
    %47 = vector.extract_strided_slice %44 {offsets = [0, 64], sizes = [8, 32], strides = [1, 1]} : vector<8x128xf32> to vector<8x32xf32>
    %48 = vector.extract_strided_slice %44 {offsets = [0, 96], sizes = [8, 32], strides = [1, 1]} : vector<8x128xf32> to vector<8x32xf32>
    %49 = arith.mulf %46, %35 : vector<8x32xf32>
    %50 = arith.mulf %45, %47 : vector<8x32xf32>
    %51 = arith.addf %49, %50 : vector<8x32xf32>
    %52 = math.tanh %51 : vector<8x32xf32>
    %53 = arith.mulf %48, %52 : vector<8x32xf32>
    %54 = arith.truncf %53 : vector<8x32xf32> to vector<8x32xbf16>
    %55 = vector.extract_strided_slice %6 {offsets = [16, 0], sizes = [8, 128], strides = [1, 1]} : vector<64x128xf32> to vector<8x128xf32>
    %cst_17 = arith.constant dense<0.000000e+00> : vector<8x128xf32>
    %56 = tpu.matmul %54, %7, %cst_17 {dimension_numbers = #tpu.dot_dimension_numbers<[1], [0], [0], [1], [0, 0, 1, 1], [], []>} : vector<8x32xbf16>, vector<32x128xbf16>, vector<8x128xf32> -> vector<8x128xf32>
    %57 = arith.addf %55, %56 : vector<8x128xf32>
    %58 = math.tanh %57 : vector<8x128xf32>
    %59 = arith.mulf %58, %19 : vector<8x128xf32>
    %60 = arith.addf %59, %22 : vector<8x128xf32>
    %61 = vector.extract_strided_slice %60 {offsets = [0, 0], sizes = [8, 32], strides = [1, 1]} : vector<8x128xf32> to vector<8x32xf32>
    %62 = vector.extract_strided_slice %60 {offsets = [0, 32], sizes = [8, 32], strides = [1, 1]} : vector<8x128xf32> to vector<8x32xf32>
    %63 = vector.extract_strided_slice %60 {offsets = [0, 64], sizes = [8, 32], strides = [1, 1]} : vector<8x128xf32> to vector<8x32xf32>
    %64 = vector.extract_strided_slice %60 {offsets = [0, 96], sizes = [8, 32], strides = [1, 1]} : vector<8x128xf32> to vector<8x32xf32>
    %65 = arith.mulf %62, %51 : vector<8x32xf32>
    %66 = arith.mulf %61, %63 : vector<8x32xf32>
    %67 = arith.addf %65, %66 : vector<8x32xf32>
    %68 = math.tanh %67 : vector<8x32xf32>
    %69 = arith.mulf %64, %68 : vector<8x32xf32>
    %70 = arith.truncf %69 : vector<8x32xf32> to vector<8x32xbf16>
    %71 = vector.extract_strided_slice %6 {offsets = [24, 0], sizes = [8, 128], strides = [1, 1]} : vector<64x128xf32> to vector<8x128xf32>
    %cst_18 = arith.constant dense<0.000000e+00> : vector<8x128xf32>
    %72 = tpu.matmul %70, %7, %cst_18 {dimension_numbers = #tpu.dot_dimension_numbers<[1], [0], [0], [1], [0, 0, 1, 1], [], []>} : vector<8x32xbf16>, vector<32x128xbf16>, vector<8x128xf32> -> vector<8x128xf32>
    %73 = arith.addf %71, %72 : vector<8x128xf32>
    %74 = math.tanh %73 : vector<8x128xf32>
    %75 = arith.mulf %74, %19 : vector<8x128xf32>
    %76 = arith.addf %75, %22 : vector<8x128xf32>
    %77 = vector.extract_strided_slice %76 {offsets = [0, 0], sizes = [8, 32], strides = [1, 1]} : vector<8x128xf32> to vector<8x32xf32>
    %78 = vector.extract_strided_slice %76 {offsets = [0, 32], sizes = [8, 32], strides = [1, 1]} : vector<8x128xf32> to vector<8x32xf32>
    %79 = vector.extract_strided_slice %76 {offsets = [0, 64], sizes = [8, 32], strides = [1, 1]} : vector<8x128xf32> to vector<8x32xf32>
    %80 = vector.extract_strided_slice %76 {offsets = [0, 96], sizes = [8, 32], strides = [1, 1]} : vector<8x128xf32> to vector<8x32xf32>
    %81 = arith.mulf %78, %67 : vector<8x32xf32>
    %82 = arith.mulf %77, %79 : vector<8x32xf32>
    %83 = arith.addf %81, %82 : vector<8x32xf32>
    %84 = math.tanh %83 : vector<8x32xf32>
    %85 = arith.mulf %80, %84 : vector<8x32xf32>
    %86 = arith.truncf %85 : vector<8x32xf32> to vector<8x32xbf16>
    %87 = vector.extract_strided_slice %6 {offsets = [32, 0], sizes = [8, 128], strides = [1, 1]} : vector<64x128xf32> to vector<8x128xf32>
    %cst_19 = arith.constant dense<0.000000e+00> : vector<8x128xf32>
    %88 = tpu.matmul %86, %7, %cst_19 {dimension_numbers = #tpu.dot_dimension_numbers<[1], [0], [0], [1], [0, 0, 1, 1], [], []>} : vector<8x32xbf16>, vector<32x128xbf16>, vector<8x128xf32> -> vector<8x128xf32>
    %89 = arith.addf %87, %88 : vector<8x128xf32>
    %90 = math.tanh %89 : vector<8x128xf32>
    %91 = arith.mulf %90, %19 : vector<8x128xf32>
    %92 = arith.addf %91, %22 : vector<8x128xf32>
    %93 = vector.extract_strided_slice %92 {offsets = [0, 0], sizes = [8, 32], strides = [1, 1]} : vector<8x128xf32> to vector<8x32xf32>
    %94 = vector.extract_strided_slice %92 {offsets = [0, 32], sizes = [8, 32], strides = [1, 1]} : vector<8x128xf32> to vector<8x32xf32>
    %95 = vector.extract_strided_slice %92 {offsets = [0, 64], sizes = [8, 32], strides = [1, 1]} : vector<8x128xf32> to vector<8x32xf32>
    %96 = vector.extract_strided_slice %92 {offsets = [0, 96], sizes = [8, 32], strides = [1, 1]} : vector<8x128xf32> to vector<8x32xf32>
    %97 = arith.mulf %94, %83 : vector<8x32xf32>
    %98 = arith.mulf %93, %95 : vector<8x32xf32>
    %99 = arith.addf %97, %98 : vector<8x32xf32>
    %100 = math.tanh %99 : vector<8x32xf32>
    %101 = arith.mulf %96, %100 : vector<8x32xf32>
    %102 = arith.truncf %101 : vector<8x32xf32> to vector<8x32xbf16>
    %103 = vector.extract_strided_slice %6 {offsets = [40, 0], sizes = [8, 128], strides = [1, 1]} : vector<64x128xf32> to vector<8x128xf32>
    %cst_20 = arith.constant dense<0.000000e+00> : vector<8x128xf32>
    %104 = tpu.matmul %102, %7, %cst_20 {dimension_numbers = #tpu.dot_dimension_numbers<[1], [0], [0], [1], [0, 0, 1, 1], [], []>} : vector<8x32xbf16>, vector<32x128xbf16>, vector<8x128xf32> -> vector<8x128xf32>
    %105 = arith.addf %103, %104 : vector<8x128xf32>
    %106 = math.tanh %105 : vector<8x128xf32>
    %107 = arith.mulf %106, %19 : vector<8x128xf32>
    %108 = arith.addf %107, %22 : vector<8x128xf32>
    %109 = vector.extract_strided_slice %108 {offsets = [0, 0], sizes = [8, 32], strides = [1, 1]} : vector<8x128xf32> to vector<8x32xf32>
    %110 = vector.extract_strided_slice %108 {offsets = [0, 32], sizes = [8, 32], strides = [1, 1]} : vector<8x128xf32> to vector<8x32xf32>
    %111 = vector.extract_strided_slice %108 {offsets = [0, 64], sizes = [8, 32], strides = [1, 1]} : vector<8x128xf32> to vector<8x32xf32>
    %112 = vector.extract_strided_slice %108 {offsets = [0, 96], sizes = [8, 32], strides = [1, 1]} : vector<8x128xf32> to vector<8x32xf32>
    %113 = arith.mulf %110, %99 : vector<8x32xf32>
    %114 = arith.mulf %109, %111 : vector<8x32xf32>
    %115 = arith.addf %113, %114 : vector<8x32xf32>
    %116 = math.tanh %115 : vector<8x32xf32>
    %117 = arith.mulf %112, %116 : vector<8x32xf32>
    %118 = arith.truncf %117 : vector<8x32xf32> to vector<8x32xbf16>
    %119 = vector.extract_strided_slice %6 {offsets = [48, 0], sizes = [8, 128], strides = [1, 1]} : vector<64x128xf32> to vector<8x128xf32>
    %cst_21 = arith.constant dense<0.000000e+00> : vector<8x128xf32>
    %120 = tpu.matmul %118, %7, %cst_21 {dimension_numbers = #tpu.dot_dimension_numbers<[1], [0], [0], [1], [0, 0, 1, 1], [], []>} : vector<8x32xbf16>, vector<32x128xbf16>, vector<8x128xf32> -> vector<8x128xf32>
    %121 = arith.addf %119, %120 : vector<8x128xf32>
    %122 = math.tanh %121 : vector<8x128xf32>
    %123 = arith.mulf %122, %19 : vector<8x128xf32>
    %124 = arith.addf %123, %22 : vector<8x128xf32>
    %125 = vector.extract_strided_slice %124 {offsets = [0, 0], sizes = [8, 32], strides = [1, 1]} : vector<8x128xf32> to vector<8x32xf32>
    %126 = vector.extract_strided_slice %124 {offsets = [0, 32], sizes = [8, 32], strides = [1, 1]} : vector<8x128xf32> to vector<8x32xf32>
    %127 = vector.extract_strided_slice %124 {offsets = [0, 64], sizes = [8, 32], strides = [1, 1]} : vector<8x128xf32> to vector<8x32xf32>
    %128 = vector.extract_strided_slice %124 {offsets = [0, 96], sizes = [8, 32], strides = [1, 1]} : vector<8x128xf32> to vector<8x32xf32>
    %129 = arith.mulf %126, %115 : vector<8x32xf32>
    %130 = arith.mulf %125, %127 : vector<8x32xf32>
    %131 = arith.addf %129, %130 : vector<8x32xf32>
    %132 = math.tanh %131 : vector<8x32xf32>
    %133 = arith.mulf %128, %132 : vector<8x32xf32>
    %134 = arith.truncf %133 : vector<8x32xf32> to vector<8x32xbf16>
    %135 = vector.extract_strided_slice %6 {offsets = [56, 0], sizes = [8, 128], strides = [1, 1]} : vector<64x128xf32> to vector<8x128xf32>
    %cst_22 = arith.constant dense<0.000000e+00> : vector<8x128xf32>
    %136 = tpu.matmul %134, %7, %cst_22 {dimension_numbers = #tpu.dot_dimension_numbers<[1], [0], [0], [1], [0, 0, 1, 1], [], []>} : vector<8x32xbf16>, vector<32x128xbf16>, vector<8x128xf32> -> vector<8x128xf32>
    %137 = arith.addf %135, %136 : vector<8x128xf32>
    %138 = math.tanh %137 : vector<8x128xf32>
    %139 = arith.mulf %138, %19 : vector<8x128xf32>
    %140 = arith.addf %139, %22 : vector<8x128xf32>
    %141 = vector.extract_strided_slice %140 {offsets = [0, 0], sizes = [8, 32], strides = [1, 1]} : vector<8x128xf32> to vector<8x32xf32>
    %142 = vector.extract_strided_slice %140 {offsets = [0, 32], sizes = [8, 32], strides = [1, 1]} : vector<8x128xf32> to vector<8x32xf32>
    %143 = vector.extract_strided_slice %140 {offsets = [0, 64], sizes = [8, 32], strides = [1, 1]} : vector<8x128xf32> to vector<8x32xf32>
    %144 = vector.extract_strided_slice %140 {offsets = [0, 96], sizes = [8, 32], strides = [1, 1]} : vector<8x128xf32> to vector<8x32xf32>
    %145 = arith.mulf %142, %131 : vector<8x32xf32>
    %146 = arith.mulf %141, %143 : vector<8x32xf32>
    %147 = arith.addf %145, %146 : vector<8x32xf32>
    %148 = math.tanh %147 : vector<8x32xf32>
    %149 = arith.mulf %144, %148 : vector<8x32xf32>
    %150 = vector.shape_cast %37 : vector<8x32xf32> to vector<1x8x32xf32>
    %151 = vector.shape_cast %53 : vector<8x32xf32> to vector<1x8x32xf32>
    %152 = vector.shape_cast %69 : vector<8x32xf32> to vector<1x8x32xf32>
    %153 = vector.shape_cast %85 : vector<8x32xf32> to vector<1x8x32xf32>
    %154 = vector.shape_cast %101 : vector<8x32xf32> to vector<1x8x32xf32>
    %155 = vector.shape_cast %117 : vector<8x32xf32> to vector<1x8x32xf32>
    %156 = vector.shape_cast %133 : vector<8x32xf32> to vector<1x8x32xf32>
    %157 = vector.shape_cast %149 : vector<8x32xf32> to vector<1x8x32xf32>
    %158 = tpu.concatenate %150, %151, %152, %153, %154, %155, %156, %157 in 0 : vector<1x8x32xf32>, vector<1x8x32xf32>, vector<1x8x32xf32>, vector<1x8x32xf32>, vector<1x8x32xf32>, vector<1x8x32xf32>, vector<1x8x32xf32>, vector<1x8x32xf32> -> vector<8x8x32xf32>
    %c0_23 = arith.constant 0 : index
    %c0_24 = arith.constant 0 : index
    %c0_25 = arith.constant 0 : index
    %159 = vector.load %arg6[%c0_23, %c0_24, %c0_25] : memref<8x8x32xf32, #tpu.memory_space<vmem>>, vector<8x8x32xf32>
    tpu.vector_store %arg6[%c0_23, %c0_24, %c0_25], %158 {strides = array<i32>} : memref<8x8x32xf32, #tpu.memory_space<vmem>>, vector<8x8x32xf32>,
    %c0_26 = arith.constant 0 : index
    %c0_27 = arith.constant 0 : index
    %c0_28 = arith.constant 0 : index
    %160 = vector.load %arg7[%c0_26, %c0_27, %c0_28] : memref<2x8x32xf32, #tpu.memory_space<vmem>>, vector<1x8x32xf32>
    %161 = vector.shape_cast %160 : vector<1x8x32xf32> to vector<8x32xf32>
    %162 = vector.shape_cast %149 : vector<8x32xf32> to vector<1x8x32xf32>
    tpu.vector_store %arg7[%c0_26, %c0_27, %c0_28], %162 {strides = array<i32>} : memref<2x8x32xf32, #tpu.memory_space<vmem>>, vector<1x8x32xf32>,
    %c1 = arith.constant 1 : index
    %c0_29 = arith.constant 0 : index
    %c0_30 = arith.constant 0 : index
    %163 = vector.load %arg7[%c1, %c0_29, %c0_30] : memref<2x8x32xf32, #tpu.memory_space<vmem>>, vector<1x8x32xf32>
    %164 = vector.shape_cast %163 : vector<1x8x32xf32> to vector<8x32xf32>
    %165 = vector.shape_cast %147 : vector<8x32xf32> to vector<1x8x32xf32>
    tpu.vector_store %arg7[%c1, %c0_29, %c0_30], %165 {strides = array<i32>} : memref<2x8x32xf32, #tpu.memory_space<vmem>>, vector<1x8x32xf32>,
    return
  }
}

</mosaic_0001>

<llo_original>
// kernel: lstm_detach_layer_forward.1
$region0: #{lstm_detach_layer_forward.1}
  #allocation0 [shape = 'u32[]', space=smem, size = 0x4, offset = 0x4, fixed_abs, tag = 'smem constant byte address 0x4 - core index']
  #allocation1 [shape = 'u32[144,128]{1,0:T(1,128)}', space=vmem, size = 0x12000, scoped, tag = 'internal scratch']
  %s0 = inlined_call_operand.hbm [shape: f32[64,16], index: 0, kind: input, shape index: {}]
  %s1 = inlined_call_operand.hbm [shape: bf16[16,128], index: 1, kind: input, shape index: {}]
  %s2 = inlined_call_operand.hbm [shape: bf16[32,128], index: 2, kind: input, shape index: {}]
  %s3 = inlined_call_operand.vmem [shape: f32[1,128], index: 3, kind: input, shape index: {}]
  %s4 = inlined_call_operand.hbm [shape: f32[8,32], index: 4, kind: input, shape index: {}]
  %s5 = inlined_call_operand.hbm [shape: f32[8,32], index: 5, kind: input, shape index: {}]
  %s6 = inlined_call_operand.hbm [shape: f32[8,8,32], index: 6, kind: output, shape index: {0}]
  %s7 = inlined_call_operand.vmem [shape: f32[2,8,32], index: 7, kind: output, shape index: {1}]
  %8 = xla_tuple %s6, %s7
  %s9 = sld [smem:[#allocation0]]
  $region62: #{lstm_detach_layer_forward.1} parent=0
    _
  %s11 = ssub.s32 1, %s9
  %s12 = scalar_select 0, %s11, %s9
  $region1: #{lstm_detach_layer_forward.1} parent=0
    #allocation2 [shape = 'u8[32768]{0}', space=vmem, size = 0x8000, scoped, tag = 'input window, operand 0, single buffered']
    #allocation3 [shape = 's32[1]{0}', space=sflag, size = 0x4, scoped, tag = 'scoped memory for lstm_detach_layer_forward.1']
    #allocation4 [shape = 's32[1]{0}', space=sflag, size = 0x4, scoped, tag = 'scoped memory for lstm_detach_layer_forward.1']
    #allocation5 [shape = 'u8[4096]{0}', space=vmem, size = 0x1000, scoped, tag = 'input window, operand 1, single buffered']
    #allocation6 [shape = 's32[1]{0}', space=sflag, size = 0x4, scoped, tag = 'scoped memory for lstm_detach_layer_forward.1']
    #allocation7 [shape = 'u8[8192]{0}', space=vmem, size = 0x2000, scoped, tag = 'input window, operand 2, single buffered']
    #allocation8 [shape = 'u8[4096]{0}', space=vmem, size = 0x1000, scoped, tag = 'input window, operand 4, single buffered']
    #allocation9 [shape = 's32[1]{0}', space=sflag, size = 0x4, scoped, tag = 'scoped memory for lstm_detach_layer_forward.1']
    #allocation10 [shape = 'u8[4096]{0}', space=vmem, size = 0x1000, scoped, tag = 'input window, operand 5, single buffered']
    #allocation11 [shape = 'u8[32768]{0}', space=vmem, size = 0x8000, scoped, tag = 'output window, operand 0, single buffered']
    %13 = vsyncpa [#allocation3], 0
    %14 = vsyncpa [#allocation6], 0
    %15 = vsyncpa [#allocation9], 0
    %16 = vsyncpa [#allocation4], 0
    // Predicated region
    $region2: #{lstm_detach_layer_forward.1} parent=1 // pred_check
      _
    $region3: #{lstm_detach_layer_forward.1} parent=1 // pred_check_branch
      %18 = sbr.rel (0) target = $region5
    $region4: #{lstm_detach_layer_forward.1} parent=1 // pred_region
      %s20 = ssub.s32 1024, 1024
      %21 = vsyncadd [#allocation3], %s20
      %s22 = sshll.u32 [#allocation2], 4
      %s23 = int_to_ptr.vmem [resolvable:$true] %s22
      %28 = dma.hbm_to_vmem [thread:$0]  %s0, 1024, %s23, [#allocation3], 128, 128, 8
    $region5: #{lstm_detach_layer_forward.1} parent=1 // pred_fallthru
      _
    // Predicated region
    $region6: #{lstm_detach_layer_forward.1} parent=1 // pred_check
      _
    $region7: #{lstm_detach_layer_forward.1} parent=1 // pred_check_branch
      %30 = sbr.rel (0) target = $region9
    $region8: #{lstm_detach_layer_forward.1} parent=1 // pred_region
      %s32 = ssub.s32 128, 128
      %33 = vsyncadd [#allocation6], %s32
      %s34 = sshll.u32 [#allocation5], 4
      %s35 = int_to_ptr.vmem [resolvable:$true] %s34
      %40 = dma.hbm_to_vmem [thread:$0]  %s1, 128, %s35, [#allocation6], 64, 64, 4
    $region9: #{lstm_detach_layer_forward.1} parent=1 // pred_fallthru
      _
    // Predicated region
    $region10: #{lstm_detach_layer_forward.1} parent=1 // pred_check
      _
    $region11: #{lstm_detach_layer_forward.1} parent=1 // pred_check_branch
      %42 = sbr.rel (0) target = $region13
    $region12: #{lstm_detach_layer_forward.1} parent=1 // pred_region
      %s44 = ssub.s32 256, 256
      %45 = vsyncadd [#allocation6], %s44
      %s46 = sshll.u32 [#allocation7], 4
      %s47 = int_to_ptr.vmem [resolvable:$true] %s46
      %52 = dma.hbm_to_vmem [thread:$0]  %s2, 256, %s47, [#allocation6], 64, 64, 4
    $region13: #{lstm_detach_layer_forward.1} parent=1 // pred_fallthru
      _
    // Predicated region
    $region14: #{lstm_detach_layer_forward.1} parent=1 // pred_check
      _
    $region15: #{lstm_detach_layer_forward.1} parent=1 // pred_check_branch
      %54 = sbr.rel (0) target = $region17
    $region16: #{lstm_detach_layer_forward.1} parent=1 // pred_region
      _
    $region17: #{lstm_detach_layer_forward.1} parent=1 // pred_fallthru
      _
    // Predicated region
    $region18: #{lstm_detach_layer_forward.1} parent=1 // pred_check
      _
    $region19: #{lstm_detach_layer_forward.1} parent=1 // pred_check_branch
      %56 = sbr.rel (0) target = $region21
    $region20: #{lstm_detach_layer_forward.1} parent=1 // pred_region
      %s58 = ssub.s32 128, 128
      %59 = vsyncadd [#allocation9], %s58
      %s61 = sshll.u32 [#allocation8], 4
      %s62 = int_to_ptr.vmem [resolvable:$true] %s61
      %64 = dma.hbm_to_vmem [thread:$0]  %s4, 128, %s62, [#allocation9]
    $region21: #{lstm_detach_layer_forward.1} parent=1 // pred_fallthru
      _
    // Predicated region
    $region22: #{lstm_detach_layer_forward.1} parent=1 // pred_check
      _
    $region23: #{lstm_detach_layer_forward.1} parent=1 // pred_check_branch
      %66 = sbr.rel (0) target = $region25
    $region24: #{lstm_detach_layer_forward.1} parent=1 // pred_region
      %s68 = ssub.s32 128, 128
      %69 = vsyncadd [#allocation9], %s68
      %s71 = sshll.u32 [#allocation10], 4
      %s72 = int_to_ptr.vmem [resolvable:$true] %s71
      %74 = dma.hbm_to_vmem [thread:$0]  %s5, 128, %s72, [#allocation9]
    $region25: #{lstm_detach_layer_forward.1} parent=1 // pred_fallthru
      _
    // Predicated region
    $region26: #{lstm_detach_layer_forward.1} parent=1 // pred_check
      _
    $region27: #{lstm_detach_layer_forward.1} parent=1 // pred_check_branch
      %76 = sbr.rel (0) target = $region29
    $region28: #{lstm_detach_layer_forward.1} parent=1 // pred_region
      %77 = dma.done [#allocation3], 1024
    $region29: #{lstm_detach_layer_forward.1} parent=1 // pred_fallthru
      _
    // Predicated region
    $region30: #{lstm_detach_layer_forward.1} parent=1 // pred_check
      _
    $region31: #{lstm_detach_layer_forward.1} parent=1 // pred_check_branch
      %79 = sbr.rel (0) target = $region33
    $region32: #{lstm_detach_layer_forward.1} parent=1 // pred_region
      %80 = dma.done [#allocation6], 128
    $region33: #{lstm_detach_layer_forward.1} parent=1 // pred_fallthru
      _
    // Predicated region
    $region34: #{lstm_detach_layer_forward.1} parent=1 // pred_check
      _
    $region35: #{lstm_detach_layer_forward.1} parent=1 // pred_check_branch
      %82 = sbr.rel (0) target = $region37
    $region36: #{lstm_detach_layer_forward.1} parent=1 // pred_region
      %83 = dma.done [#allocation6], 256
    $region37: #{lstm_detach_layer_forward.1} parent=1 // pred_fallthru
      _
    // Predicated region
    $region38: #{lstm_detach_layer_forward.1} parent=1 // pred_check
      _
    $region39: #{lstm_detach_layer_forward.1} parent=1 // pred_check_branch
      %85 = sbr.rel (0) target = $region41
    $region40: #{lstm_detach_layer_forward.1} parent=1 // pred_region
      %86 = dma.done [#allocation9], 128
    $region41: #{lstm_detach_layer_forward.1} parent=1 // pred_fallthru
      _
    // Predicated region
    $region42: #{lstm_detach_layer_forward.1} parent=1 // pred_check
      _
    $region43: #{lstm_detach_layer_forward.1} parent=1 // pred_check_branch
      %88 = sbr.rel (0) target = $region45
    $region44: #{lstm_detach_layer_forward.1} parent=1 // pred_region
      %89 = dma.done [#allocation9], 128
    $region45: #{lstm_detach_layer_forward.1} parent=1 // pred_fallthru
      _
    %v91 = vld [vmem:[#allocation2] sm:$0xff]
    %v92 = vld [vmem:[#allocation2 + $0x8] sm:$0xff]
    %v93 = vld [vmem:[#allocation2 + $0x10] sm:$0xff]
    %v94 = vld [vmem:[#allocation2 + $0x18] sm:$0xff]
    %v95 = vld [vmem:[#allocation2 + $0x20] sm:$0xff]
    %v96 = vld [vmem:[#allocation2 + $0x28] sm:$0xff]
    %v97 = vld [vmem:[#allocation2 + $0x30] sm:$0xff]
    %v98 = vld [vmem:[#allocation2 + $0x38] sm:$0xff]
    %v99 = vpack.c.bf16 %v92, %v91
    %v100 = vpack.c.bf16 %v94, %v93
    %v101 = vpack.c.bf16 %v96, %v95
    %v102 = vpack.c.bf16 %v98, %v97
    %v103 = vld [vmem:[#allocation5] sm:$0xf]
    %v104 = vld [vmem:[#allocation5 + $0x4] sm:$0xf]
    %v105 = vld [vmem:[%s3] sm:$0x1]
    %v107 = vlaneseq
    %v108 = vshrl.u32 %v107, 7
    %v109 = vsub.s32 0, %v108
    %v110 = vrot.slane %v105, %v109
    %v114 = vunpack.c.l.b16 %v103
    %v115 = vunpack.c.l.b16 %v104
    %v116 = vpack.c.b16 %v115, %v114
    %vm118 = vcmask 130048
    %v120 = vsel %vm118, %v99, 0
    %v123 = vsel %vm118, %v100, 0
    %v126 = vsel %vm118, %v101, 0
    %v129 = vsel %vm118, %v102, 0
    %131 = vmatprep.subr.bf16.mxu0 0
    %132 = vmatpush1.bf16.msra.mxu0 0
    %133 = vmatprep.subr.bf16.mxu0 0
    %134 = vmatpush1.bf16.msra.mxu0 0
    %135 = vmatprep.subr.bf16.mxu0 0
    %136 = vmatpush1.bf16.msra.mxu0 0
    %137 = vmatprep.subr.bf16.mxu0 0
    %138 = vmatpush1.bf16.msra.mxu0 0
    %139 = vmatprep.subr.bf16.mxu0 0
    %140 = vmatpush1.bf16.msra.mxu0 0
    %141 = vmatprep.subr.bf16.mxu0 0
    %142 = vmatpush1.bf16.msra.mxu0 0
    %143 = vmatprep.subr.bf16.mxu0 0
    %144 = vmatpush1.bf16.msra.mxu0 0
    %145 = vmatprep.subr.bf16.mxu0 0
    %146 = vmatpush1.bf16.msra.mxu0 %v116
    %147 = vmatprep.subr.bf16.mxu0 0
    %148 = vmatpush2.bf16.msra.mxu0 0
    %149 = vmatprep.subr.bf16.mxu0 0
    %150 = vmatpush2.bf16.msra.mxu0 0
    %151 = vmatprep.subr.bf16.mxu0 0
    %152 = vmatpush2.bf16.msra.mxu0 0
    %153 = vmatprep.subr.bf16.mxu0 0
    %154 = vmatpush2.bf16.msra.mxu0 0
    %155 = vmatprep.subr.bf16.mxu0 0
    %156 = vmatpush2.bf16.msra.mxu0 0
    %157 = vmatprep.subr.bf16.mxu0 0
    %158 = vmatpush2.bf16.msra.mxu0 0
    %159 = vmatprep.subr.bf16.mxu0 0
    %160 = vmatpush2.bf16.msra.mxu0 0
    %161 = vmatprep.subr.bf16.mxu0 0
    %162 = vmatpush2.bf16.msra.mxu0 0
    %163 = vmatprep.mubr.bf16.mxu0 0
    %164 = vmatmul.mubr.bf16.gmra.mxu0 %v120
    %v165 = vpop.f32.mrf.mxu0
    %v166 = vadd.f32 %v110, %v165
    %v167 = vpop.f32.mrf.mxu0
    %v168 = vpop.f32.mrf.mxu0
    %v169 = vadd.f32 %v110, %v168
    %v170 = vpop.f32.mrf.mxu0
    %171 = vmatprep.mubr.bf16.mxu0 0
    %172 = vmatmul.mubr.bf16.gmra.mxu0 %v123
    %v173 = vpop.f32.mrf.mxu0
    %v174 = vadd.f32 %v110, %v173
    %v175 = vpop.f32.mrf.mxu0
    %v176 = vpop.f32.mrf.mxu0
    %v177 = vadd.f32 %v110, %v176
    %v178 = vpop.f32.mrf.mxu0
    %179 = vmatprep.mubr.bf16.mxu0 0
    %180 = vmatmul.mubr.bf16.gmra.mxu0 %v126
    %v181 = vpop.f32.mrf.mxu0
    %v182 = vadd.f32 %v110, %v181
    %v183 = vpop.f32.mrf.mxu0
    %v184 = vpop.f32.mrf.mxu0
    %v185 = vadd.f32 %v110, %v184
    %v186 = vpop.f32.mrf.mxu0
    %187 = vmatprep.mubr.bf16.mxu0 0
    %188 = vmatmul.mubr.bf16.gmra.mxu0 %v129
    %v189 = vpop.f32.mrf.mxu0
    %v190 = vadd.f32 %v110, %v189
    %v191 = vpop.f32.mrf.mxu0
    %v192 = vpop.f32.mrf.mxu0
    %v193 = vadd.f32 %v110, %v192
    %v194 = vpop.f32.mrf.mxu0
    %195 = vdwg.mxu0
    %v196 = vld [vmem:[#allocation7] sm:$0xf]
    %v197 = vld [vmem:[#allocation7 + $0x4] sm:$0xf]
    %v198 = vld [vmem:[#allocation7 + $0x8] sm:$0xf]
    %v199 = vld [vmem:[#allocation7 + $0xc] sm:$0xf]
    %v200 = vld [vmem:[#allocation8] sm:$0xff]
    %v201 = vld [vmem:[#allocation10] sm:$0xff]
    %v202 = vpack.c.bf16 %v200, %v200
    %v203 = vlaneseq
    %v204 = vand.u32 %v203, 127
    %vm205 = vcmp.ge.s32.totalorder %v204, 64
    %vm206 = vcmp.lt.s32.totalorder %v204, 96
    %vm207 = vmand %vm205, %vm206
    %v208 = vsel %vm207, 1.0, 0.5
    %v209 = vsel %vm207, 0.0, 0.5
    %v214 = vunpack.c.l.b16 %v196
    %v215 = vunpack.c.l.b16 %v197
    %v216 = vunpack.c.l.b16 %v198
    %v217 = vunpack.c.l.b16 %v199
    %v218 = vpack.c.b16 %v215, %v214
    %v219 = vpack.c.b16 %v217, %v216
    %vm222 = vcmask 261120
    %v224 = vsel %vm222, %v202, 0
    %226 = vmatprep.subr.bf16.mxu0 0
    %227 = vmatpush1.bf16.msra.mxu0 0
    %228 = vmatprep.subr.bf16.mxu0 0
    %229 = vmatpush1.bf16.msra.mxu0 0
    %230 = vmatprep.subr.bf16.mxu0 0
    %231 = vmatpush1.bf16.msra.mxu0 0
    %232 = vmatprep.subr.bf16.mxu0 0
    %233 = vmatpush1.bf16.msra.mxu0 0
    %234 = vmatprep.subr.bf16.mxu0 0
    %235 = vmatpush1.bf16.msra.mxu0 0
    %236 = vmatprep.subr.bf16.mxu0 0
    %237 = vmatpush1.bf16.msra.mxu0 0
    %238 = vmatprep.subr.bf16.mxu0 0
    %239 = vmatpush1.bf16.msra.mxu0 %v219
    %240 = vmatprep.subr.bf16.mxu0 0
    %241 = vmatpush1.bf16.msra.mxu0 %v218
    %242 = vmatprep.subr.bf16.mxu0 0
    %243 = vmatpush2.bf16.msra.mxu0 0
    %244 = vmatprep.subr.bf16.mxu0 0
    %245 = vmatpush2.bf16.msra.mxu0 0
    %246 = vmatprep.subr.bf16.mxu0 0
    %247 = vmatpush2.bf16.msra.mxu0 0
    %248 = vmatprep.subr.bf16.mxu0 0
    %249 = vmatpush2.bf16.msra.mxu0 0
    %250 = vmatprep.subr.bf16.mxu0 0
    %251 = vmatpush2.bf16.msra.mxu0 0
    %252 = vmatprep.subr.bf16.mxu0 0
    %253 = vmatpush2.bf16.msra.mxu0 0
    %254 = vmatprep.subr.bf16.mxu0 0
    %255 = vmatpush2.bf16.msra.mxu0 0
    %256 = vmatprep.subr.bf16.mxu0 0
    %257 = vmatpush2.bf16.msra.mxu0 0
    %258 = vmatprep.mubr.bf16.mxu0 0
    %259 = vmatmul.mubr.bf16.gmra.mxu0 %v224
    %v260 = vpop.f32.mrf.mxu0
    %v261 = vadd.f32 0.0, %v260
    %v262 = vpop.f32.mrf.mxu0
    %v263 = vpop.f32.mrf.mxu0
    %v264 = vpop.f32.mrf.mxu0
    %265 = vdwg.mxu0
    %v266 = vadd.f32 %v166, %v261
    %v267 = vtanh.pop %v266
    %v268 = vmul.f32 %v267, %v208
    %v269 = vadd.f32 %v268, %v209
    %271 = vrot.lane.b32.xlu0 %v201, 32
    %v272 = vpop.permute.xlu0 %271
    %v274 = vmul.f32 %v269, %v272
    %276 = vrot.lane.b32.xlu0 %v269, 64
    %v277 = vpop.permute.xlu0 %276
    %v279 = vmul.f32 %v269, %v277
    %281 = vrot.lane.b32.xlu0 %v279, 32
    %v282 = vpop.permute.xlu0 %281
    %v284 = vadd.f32 %v274, %v282
    %v285 = vtanh.pop %v284
    %287 = vrot.lane.b32.xlu0 %v285, 64
    %v288 = vpop.permute.xlu0 %287
    %v290 = vmul.f32 %v269, %v288
    %v291 = vpack.c.bf16 %v290, %v290
    %293 = vrot.lane.b32.xlu0 %v291, 32
    %v294 = vpop.permute.xlu0 %293
    %v296 = vsel %vm222, %v294, 0
    %298 = vmatprep.subr.bf16.mxu0 0
    %299 = vmatpush1.bf16.msra.mxu0 0
    %300 = vmatprep.subr.bf16.mxu0 0
    %301 = vmatpush1.bf16.msra.mxu0 0
    %302 = vmatprep.subr.bf16.mxu0 0
    %303 = vmatpush1.bf16.msra.mxu0 0
    %304 = vmatprep.subr.bf16.mxu0 0
    %305 = vmatpush1.bf16.msra.mxu0 0
    %306 = vmatprep.subr.bf16.mxu0 0
    %307 = vmatpush1.bf16.msra.mxu0 0
    %308 = vmatprep.subr.bf16.mxu0 0
    %309 = vmatpush1.bf16.msra.mxu0 0
    %310 = vmatprep.subr.bf16.mxu0 0
    %311 = vmatpush1.bf16.msra.mxu0 %v219
    %312 = vmatprep.subr.bf16.mxu0 0
    %313 = vmatpush1.bf16.msra.mxu0 %v218
    %314 = vmatprep.subr.bf16.mxu0 0
    %315 = vmatpush2.bf16.msra.mxu0 0
    %316 = vmatprep.subr.bf16.mxu0 0
    %317 = vmatpush2.bf16.msra.mxu0 0
    %318 = vmatprep.subr.bf16.mxu0 0
    %319 = vmatpush2.bf16.msra.mxu0 0
    %320 = vmatprep.subr.bf16.mxu0 0
    %321 = vmatpush2.bf16.msra.mxu0 0
    %322 = vmatprep.subr.bf16.mxu0 0
    %323 = vmatpush2.bf16.msra.mxu0 0
    %324 = vmatprep.subr.bf16.mxu0 0
    %325 = vmatpush2.bf16.msra.mxu0 0
    %326 = vmatprep.subr.bf16.mxu0 0
    %327 = vmatpush2.bf16.msra.mxu0 0
    %328 = vmatprep.subr.bf16.mxu0 0
    %329 = vmatpush2.bf16.msra.mxu0 0
    %330 = vmatprep.mubr.bf16.mxu0 0
    %331 = vmatmul.mubr.bf16.gmra.mxu0 %v296
    %v332 = vpop.f32.mrf.mxu0
    %v333 = vadd.f32 0.0, %v332
    %v334 = vpop.f32.mrf.mxu0
    %v335 = vpop.f32.mrf.mxu0
    %v336 = vpop.f32.mrf.mxu0
    %337 = vdwg.mxu0
    %v338 = vadd.f32 %v169, %v333
    %v339 = vtanh.pop %v338
    %v340 = vmul.f32 %v339, %v208
    %v341 = vadd.f32 %v340, %v209
    %v342 = vmul.f32 %v341, %v284
    %344 = vrot.lane.b32.xlu0 %v341, 64
    %v345 = vpop.permute.xlu0 %344
    %v347 = vmul.f32 %v341, %v345
    %349 = vrot.lane.b32.xlu0 %v347, 32
    %v350 = vpop.permute.xlu0 %349
    %v352 = vadd.f32 %v342, %v350
    %v353 = vtanh.pop %v352
    %355 = vrot.lane.b32.xlu0 %v353, 64
    %v356 = vpop.permute.xlu0 %355
    %v358 = vmul.f32 %v341, %v356
    %v359 = vpack.c.bf16 %v358, %v358
    %361 = vrot.lane.b32.xlu0 %v359, 32
    %v362 = vpop.permute.xlu0 %361
    %v364 = vsel %vm222, %v362, 0
    %366 = vmatprep.subr.bf16.mxu0 0
    %367 = vmatpush1.bf16.msra.mxu0 0
    %368 = vmatprep.subr.bf16.mxu0 0
    %369 = vmatpush1.bf16.msra.mxu0 0
    %370 = vmatprep.subr.bf16.mxu0 0
    %371 = vmatpush1.bf16.msra.mxu0 0
    %372 = vmatprep.subr.bf16.mxu0 0
    %373 = vmatpush1.bf16.msra.mxu0 0
    %374 = vmatprep.subr.bf16.mxu0 0
    %375 = vmatpush1.bf16.msra.mxu0 0
    %376 = vmatprep.subr.bf16.mxu0 0
    %377 = vmatpush1.bf16.msra.mxu0 0
    %378 = vmatprep.subr.bf16.mxu0 0
    %379 = vmatpush1.bf16.msra.mxu0 %v219
    %380 = vmatprep.subr.bf16.mxu0 0
    %381 = vmatpush1.bf16.msra.mxu0 %v218
    %382 = vmatprep.subr.bf16.mxu0 0
    %383 = vmatpush2.bf16.msra.mxu0 0
    %384 = vmatprep.subr.bf16.mxu0 0
    %385 = vmatpush2.bf16.msra.mxu0 0
    %386 = vmatprep.subr.bf16.mxu0 0
    %387 = vmatpush2.bf16.msra.mxu0 0
    %388 = vmatprep.subr.bf16.mxu0 0
    %389 = vmatpush2.bf16.msra.mxu0 0
    %390 = vmatprep.subr.bf16.mxu0 0
    %391 = vmatpush2.bf16.msra.mxu0 0
    %392 = vmatprep.subr.bf16.mxu0 0
    %393 = vmatpush2.bf16.msra.mxu0 0
    %394 = vmatprep.subr.bf16.mxu0 0
    %395 = vmatpush2.bf16.msra.mxu0 0
    %396 = vmatprep.subr.bf16.mxu0 0
    %397 = vmatpush2.bf16.msra.mxu0 0
    %398 = vmatprep.mubr.bf16.mxu0 0
    %399 = vmatmul.mubr.bf16.gmra.mxu0 %v364
    %v400 = vpop.f32.mrf.mxu0
    %v401 = vadd.f32 0.0, %v400
    %v402 = vpop.f32.mrf.mxu0
    %v403 = vpop.f32.mrf.mxu0
    %v404 = vpop.f32.mrf.mxu0
    %405 = vdwg.mxu0
    %v406 = vadd.f32 %v174, %v401
    %v407 = vtanh.pop %v406
    %v408 = vmul.f32 %v407, %v208
    %v409 = vadd.f32 %v408, %v209
    %v410 = vmul.f32 %v409, %v352
    %412 = vrot.lane.b32.xlu0 %v409, 64
    %v413 = vpop.permute.xlu0 %412
    %v415 = vmul.f32 %v409, %v413
    %417 = vrot.lane.b32.xlu0 %v415, 32
    %v418 = vpop.permute.xlu0 %417
    %v420 = vadd.f32 %v410, %v418
    %v421 = vtanh.pop %v420
    %423 = vrot.lane.b32.xlu0 %v421, 64
    %v424 = vpop.permute.xlu0 %423
    %v426 = vmul.f32 %v409, %v424
    %v427 = vpack.c.bf16 %v426, %v426
    %429 = vrot.lane.b32.xlu0 %v427, 32
    %v430 = vpop.permute.xlu0 %429
    %v432 = vsel %vm222, %v430, 0
    %434 = vmatprep.subr.bf16.mxu0 0
    %435 = vmatpush1.bf16.msra.mxu0 0
    %436 = vmatprep.subr.bf16.mxu0 0
    %437 = vmatpush1.bf16.msra.mxu0 0
    %438 = vmatprep.subr.bf16.mxu0 0
    %439 = vmatpush1.bf16.msra.mxu0 0
    %440 = vmatprep.subr.bf16.mxu0 0
    %441 = vmatpush1.bf16.msra.mxu0 0
    %442 = vmatprep.subr.bf16.mxu0 0
    %443 = vmatpush1.bf16.msra.mxu0 0
    %444 = vmatprep.subr.bf16.mxu0 0
    %445 = vmatpush1.bf16.msra.mxu0 0
    %446 = vmatprep.subr.bf16.mxu0 0
    %447 = vmatpush1.bf16.msra.mxu0 %v219
    %448 = vmatprep.subr.bf16.mxu0 0
    %449 = vmatpush1.bf16.msra.mxu0 %v218
    %450 = vmatprep.subr.bf16.mxu0 0
    %451 = vmatpush2.bf16.msra.mxu0 0
    %452 = vmatprep.subr.bf16.mxu0 0
    %453 = vmatpush2.bf16.msra.mxu0 0
    %454 = vmatprep.subr.bf16.mxu0 0
    %455 = vmatpush2.bf16.msra.mxu0 0
    %456 = vmatprep.subr.bf16.mxu0 0
    %457 = vmatpush2.bf16.msra.mxu0 0
    %458 = vmatprep.subr.bf16.mxu0 0
    %459 = vmatpush2.bf16.msra.mxu0 0
    %460 = vmatprep.subr.bf16.mxu0 0
    %461 = vmatpush2.bf16.msra.mxu0 0
    %462 = vmatprep.subr.bf16.mxu0 0
    %463 = vmatpush2.bf16.msra.mxu0 0
    %464 = vmatprep.subr.bf16.mxu0 0
    %465 = vmatpush2.bf16.msra.mxu0 0
    %466 = vmatprep.mubr.bf16.mxu0 0
    %467 = vmatmul.mubr.bf16.gmra.mxu0 %v432
    %v468 = vpop.f32.mrf.mxu0
    %v469 = vadd.f32 0.0, %v468
    %v470 = vpop.f32.mrf.mxu0
    %v471 = vpop.f32.mrf.mxu0
    %v472 = vpop.f32.mrf.mxu0
    %473 = vdwg.mxu0
    %v474 = vadd.f32 %v177, %v469
    %v475 = vtanh.pop %v474
    %v476 = vmul.f32 %v475, %v208
    %v477 = vadd.f32 %v476, %v209
    %v478 = vmul.f32 %v477, %v420
    %480 = vrot.lane.b32.xlu0 %v477, 64
    %v481 = vpop.permute.xlu0 %480
    %v483 = vmul.f32 %v477, %v481
    %485 = vrot.lane.b32.xlu0 %v483, 32
    %v486 = vpop.permute.xlu0 %485
    %v488 = vadd.f32 %v478, %v486
    %v489 = vtanh.pop %v488
    %491 = vrot.lane.b32.xlu0 %v489, 64
    %v492 = vpop.permute.xlu0 %491
    %v494 = vmul.f32 %v477, %v492
    %v495 = vpack.c.bf16 %v494, %v494
    %497 = vrot.lane.b32.xlu0 %v495, 32
    %v498 = vpop.permute.xlu0 %497
    %v500 = vsel %vm222, %v498, 0
    %502 = vmatprep.subr.bf16.mxu0 0
    %503 = vmatpush1.bf16.msra.mxu0 0
    %504 = vmatprep.subr.bf16.mxu0 0
    %505 = vmatpush1.bf16.msra.mxu0 0
    %506 = vmatprep.subr.bf16.mxu0 0
    %507 = vmatpush1.bf16.msra.mxu0 0
    %508 = vmatprep.subr.bf16.mxu0 0
    %509 = vmatpush1.bf16.msra.mxu0 0
    %510 = vmatprep.subr.bf16.mxu0 0
    %511 = vmatpush1.bf16.msra.mxu0 0
    %512 = vmatprep.subr.bf16.mxu0 0
    %513 = vmatpush1.bf16.msra.mxu0 0
    %514 = vmatprep.subr.bf16.mxu0 0
    %515 = vmatpush1.bf16.msra.mxu0 %v219
    %516 = vmatprep.subr.bf16.mxu0 0
    %517 = vmatpush1.bf16.msra.mxu0 %v218
    %518 = vmatprep.subr.bf16.mxu0 0
    %519 = vmatpush2.bf16.msra.mxu0 0
    %520 = vmatprep.subr.bf16.mxu0 0
    %521 = vmatpush2.bf16.msra.mxu0 0
    %522 = vmatprep.subr.bf16.mxu0 0
    %523 = vmatpush2.bf16.msra.mxu0 0
    %524 = vmatprep.subr.bf16.mxu0 0
    %525 = vmatpush2.bf16.msra.mxu0 0
    %526 = vmatprep.subr.bf16.mxu0 0
    %527 = vmatpush2.bf16.msra.mxu0 0
    %528 = vmatprep.subr.bf16.mxu0 0
    %529 = vmatpush2.bf16.msra.mxu0 0
    %530 = vmatprep.subr.bf16.mxu0 0
    %531 = vmatpush2.bf16.msra.mxu0 0
    %532 = vmatprep.subr.bf16.mxu0 0
    %533 = vmatpush2.bf16.msra.mxu0 0
    %534 = vmatprep.mubr.bf16.mxu0 0
    %535 = vmatmul.mubr.bf16.gmra.mxu0 %v500
    %v536 = vpop.f32.mrf.mxu0
    %v537 = vadd.f32 0.0, %v536
    %v538 = vpop.f32.mrf.mxu0
    %v539 = vpop.f32.mrf.mxu0
    %v540 = vpop.f32.mrf.mxu0
    %541 = vdwg.mxu0
    %v542 = vadd.f32 %v182, %v537
    %v543 = vtanh.pop %v542
    %v544 = vmul.f32 %v543, %v208
    %v545 = vadd.f32 %v544, %v209
    %v546 = vmul.f32 %v545, %v488
    %548 = vrot.lane.b32.xlu0 %v545, 64
    %v549 = vpop.permute.xlu0 %548
    %v551 = vmul.f32 %v545, %v549
    %553 = vrot.lane.b32.xlu0 %v551, 32
    %v554 = vpop.permute.xlu0 %553
    %v556 = vadd.f32 %v546, %v554
    %v557 = vtanh.pop %v556
    %559 = vrot.lane.b32.xlu0 %v557, 64
    %v560 = vpop.permute.xlu0 %559
    %v562 = vmul.f32 %v545, %v560
    %v563 = vpack.c.bf16 %v562, %v562
    %565 = vrot.lane.b32.xlu0 %v563, 32
    %v566 = vpop.permute.xlu0 %565
    %v568 = vsel %vm222, %v566, 0
    %570 = vmatprep.subr.bf16.mxu0 0
    %571 = vmatpush1.bf16.msra.mxu0 0
    %572 = vmatprep.subr.bf16.mxu0 0
    %573 = vmatpush1.bf16.msra.mxu0 0
    %574 = vmatprep.subr.bf16.mxu0 0
    %575 = vmatpush1.bf16.msra.mxu0 0
    %576 = vmatprep.subr.bf16.mxu0 0
    %577 = vmatpush1.bf16.msra.mxu0 0
    %578 = vmatprep.subr.bf16.mxu0 0
    %579 = vmatpush1.bf16.msra.mxu0 0
    %580 = vmatprep.subr.bf16.mxu0 0
    %581 = vmatpush1.bf16.msra.mxu0 0
    %582 = vmatprep.subr.bf16.mxu0 0
    %583 = vmatpush1.bf16.msra.mxu0 %v219
    %584 = vmatprep.subr.bf16.mxu0 0
    %585 = vmatpush1.bf16.msra.mxu0 %v218
    %586 = vmatprep.subr.bf16.mxu0 0
    %587 = vmatpush2.bf16.msra.mxu0 0
    %588 = vmatprep.subr.bf16.mxu0 0
    %589 = vmatpush2.bf16.msra.mxu0 0
    %590 = vmatprep.subr.bf16.mxu0 0
    %591 = vmatpush2.bf16.msra.mxu0 0
    %592 = vmatprep.subr.bf16.mxu0 0
    %593 = vmatpush2.bf16.msra.mxu0 0
    %594 = vmatprep.subr.bf16.mxu0 0
    %595 = vmatpush2.bf16.msra.mxu0 0
    %596 = vmatprep.subr.bf16.mxu0 0
    %597 = vmatpush2.bf16.msra.mxu0 0
    %598 = vmatprep.subr.bf16.mxu0 0
    %599 = vmatpush2.bf16.msra.mxu0 0
    %600 = vmatprep.subr.bf16.mxu0 0
    %601 = vmatpush2.bf16.msra.mxu0 0
    %602 = vmatprep.mubr.bf16.mxu0 0
    %603 = vmatmul.mubr.bf16.gmra.mxu0 %v568
    %v604 = vpop.f32.mrf.mxu0
    %v605 = vadd.f32 0.0, %v604
    %v606 = vpop.f32.mrf.mxu0
    %v607 = vpop.f32.mrf.mxu0
    %v608 = vpop.f32.mrf.mxu0
    %609 = vdwg.mxu0
    %v610 = vadd.f32 %v185, %v605
    %v611 = vtanh.pop %v610
    %v612 = vmul.f32 %v611, %v208
    %v613 = vadd.f32 %v612, %v209
    %v614 = vmul.f32 %v613, %v556
    %616 = vrot.lane.b32.xlu0 %v613, 64
    %v617 = vpop.permute.xlu0 %616
    %v619 = vmul.f32 %v613, %v617
    %621 = vrot.lane.b32.xlu0 %v619, 32
    %v622 = vpop.permute.xlu0 %621
    %v624 = vadd.f32 %v614, %v622
    %v625 = vtanh.pop %v624
    %627 = vrot.lane.b32.xlu0 %v625, 64
    %v628 = vpop.permute.xlu0 %627
    %v630 = vmul.f32 %v613, %v628
    %v631 = vpack.c.bf16 %v630, %v630
    %633 = vrot.lane.b32.xlu0 %v631, 32
    %v634 = vpop.permute.xlu0 %633
    %v636 = vsel %vm222, %v634, 0
    %638 = vmatprep.subr.bf16.mxu0 0
    %639 = vmatpush1.bf16.msra.mxu0 0
    %640 = vmatprep.subr.bf16.mxu0 0
    %641 = vmatpush1.bf16.msra.mxu0 0
    %642 = vmatprep.subr.bf16.mxu0 0
    %643 = vmatpush1.bf16.msra.mxu0 0
    %644 = vmatprep.subr.bf16.mxu0 0
    %645 = vmatpush1.bf16.msra.mxu0 0
    %646 = vmatprep.subr.bf16.mxu0 0
    %647 = vmatpush1.bf16.msra.mxu0 0
    %648 = vmatprep.subr.bf16.mxu0 0
    %649 = vmatpush1.bf16.msra.mxu0 0
    %650 = vmatprep.subr.bf16.mxu0 0
    %651 = vmatpush1.bf16.msra.mxu0 %v219
    %652 = vmatprep.subr.bf16.mxu0 0
    %653 = vmatpush1.bf16.msra.mxu0 %v218
    %654 = vmatprep.subr.bf16.mxu0 0
    %655 = vmatpush2.bf16.msra.mxu0 0
    %656 = vmatprep.subr.bf16.mxu0 0
    %657 = vmatpush2.bf16.msra.mxu0 0
    %658 = vmatprep.subr.bf16.mxu0 0
    %659 = vmatpush2.bf16.msra.mxu0 0
    %660 = vmatprep.subr.bf16.mxu0 0
    %661 = vmatpush2.bf16.msra.mxu0 0
    %662 = vmatprep.subr.bf16.mxu0 0
    %663 = vmatpush2.bf16.msra.mxu0 0
    %664 = vmatprep.subr.bf16.mxu0 0
    %665 = vmatpush2.bf16.msra.mxu0 0
    %666 = vmatprep.subr.bf16.mxu0 0
    %667 = vmatpush2.bf16.msra.mxu0 0
    %668 = vmatprep.subr.bf16.mxu0 0
    %669 = vmatpush2.bf16.msra.mxu0 0
    %670 = vmatprep.mubr.bf16.mxu0 0
    %671 = vmatmul.mubr.bf16.gmra.mxu0 %v636
    %v672 = vpop.f32.mrf.mxu0
    %v673 = vadd.f32 0.0, %v672
    %v674 = vpop.f32.mrf.mxu0
    %v675 = vpop.f32.mrf.mxu0
    %v676 = vpop.f32.mrf.mxu0
    %677 = vdwg.mxu0
    %v678 = vadd.f32 %v190, %v673
    %v679 = vtanh.pop %v678
    %v680 = vmul.f32 %v679, %v208
    %v681 = vadd.f32 %v680, %v209
    %v682 = vmul.f32 %v681, %v624
    %684 = vrot.lane.b32.xlu0 %v681, 64
    %v685 = vpop.permute.xlu0 %684
    %v687 = vmul.f32 %v681, %v685
    %689 = vrot.lane.b32.xlu0 %v687, 32
    %v690 = vpop.permute.xlu0 %689
    %v692 = vadd.f32 %v682, %v690
    %v693 = vtanh.pop %v692
    %695 = vrot.lane.b32.xlu0 %v693, 64
    %v696 = vpop.permute.xlu0 %695
    %v698 = vmul.f32 %v681, %v696
    %v699 = vpack.c.bf16 %v698, %v698
    %701 = vrot.lane.b32.xlu0 %v699, 32
    %v702 = vpop.permute.xlu0 %701
    %v704 = vsel %vm222, %v702, 0
    %706 = vmatprep.subr.bf16.mxu0 0
    %707 = vmatpush1.bf16.msra.mxu0 0
    %708 = vmatprep.subr.bf16.mxu0 0
    %709 = vmatpush1.bf16.msra.mxu0 0
    %710 = vmatprep.subr.bf16.mxu0 0
    %711 = vmatpush1.bf16.msra.mxu0 0
    %712 = vmatprep.subr.bf16.mxu0 0
    %713 = vmatpush1.bf16.msra.mxu0 0
    %714 = vmatprep.subr.bf16.mxu0 0
    %715 = vmatpush1.bf16.msra.mxu0 0
    %716 = vmatprep.subr.bf16.mxu0 0
    %717 = vmatpush1.bf16.msra.mxu0 0
    %718 = vmatprep.subr.bf16.mxu0 0
    %719 = vmatpush1.bf16.msra.mxu0 %v219
    %720 = vmatprep.subr.bf16.mxu0 0
    %721 = vmatpush1.bf16.msra.mxu0 %v218
    %722 = vmatprep.subr.bf16.mxu0 0
    %723 = vmatpush2.bf16.msra.mxu0 0
    %724 = vmatprep.subr.bf16.mxu0 0
    %725 = vmatpush2.bf16.msra.mxu0 0
    %726 = vmatprep.subr.bf16.mxu0 0
    %727 = vmatpush2.bf16.msra.mxu0 0
    %728 = vmatprep.subr.bf16.mxu0 0
    %729 = vmatpush2.bf16.msra.mxu0 0
    %730 = vmatprep.subr.bf16.mxu0 0
    %731 = vmatpush2.bf16.msra.mxu0 0
    %732 = vmatprep.subr.bf16.mxu0 0
    %733 = vmatpush2.bf16.msra.mxu0 0
    %734 = vmatprep.subr.bf16.mxu0 0
    %735 = vmatpush2.bf16.msra.mxu0 0
    %736 = vmatprep.subr.bf16.mxu0 0
    %737 = vmatpush2.bf16.msra.mxu0 0
    %738 = vmatprep.mubr.bf16.mxu0 0
    %739 = vmatmul.mubr.bf16.gmra.mxu0 %v704
    %v740 = vpop.f32.mrf.mxu0
    %v741 = vadd.f32 0.0, %v740
    %v742 = vpop.f32.mrf.mxu0
    %v743 = vpop.f32.mrf.mxu0
    %v744 = vpop.f32.mrf.mxu0
    %745 = vdwg.mxu0
    %v746 = vadd.f32 %v193, %v741
    %v747 = vtanh.pop %v746
    %v748 = vmul.f32 %v747, %v208
    %v749 = vadd.f32 %v748, %v209
    %v750 = vmul.f32 %v749, %v692
    %752 = vrot.lane.b32.xlu0 %v749, 64
    %v753 = vpop.permute.xlu0 %752
    %v755 = vmul.f32 %v749, %v753
    %757 = vrot.lane.b32.xlu0 %v755, 32
    %v758 = vpop.permute.xlu0 %757
    %v760 = vadd.f32 %v750, %v758
    %v761 = vtanh.pop %v760
    %763 = vrot.lane.b32.xlu0 %v761, 64
    %v764 = vpop.permute.xlu0 %763
    %v766 = vmul.f32 %v749, %v764
    %775 = vrot.lane.b32.xlu0 %v290, 32
    %v776 = vpop.permute.xlu0 %775
    %777 = vrot.lane.b32.xlu0 %v358, 32
    %v778 = vpop.permute.xlu0 %777
    %779 = vrot.lane.b32.xlu0 %v426, 32
    %v780 = vpop.permute.xlu0 %779
    %781 = vrot.lane.b32.xlu0 %v494, 32
    %v782 = vpop.permute.xlu0 %781
    %783 = vrot.lane.b32.xlu0 %v562, 32
    %v784 = vpop.permute.xlu0 %783
    %785 = vrot.lane.b32.xlu0 %v630, 32
    %v786 = vpop.permute.xlu0 %785
    %787 = vrot.lane.b32.xlu0 %v698, 32
    %v788 = vpop.permute.xlu0 %787
    %789 = vrot.lane.b32.xlu0 %v766, 32
    %v790 = vpop.permute.xlu0 %789
    %799 = vst.msk [vmem:[#allocation11] sm:$0xff] %vm222, %v776
    %800 = vst.msk [vmem:[#allocation11 + $0x8] sm:$0xff] %vm222, %v778
    %801 = vst.msk [vmem:[#allocation11 + $0x10] sm:$0xff] %vm222, %v780
    %802 = vst.msk [vmem:[#allocation11 + $0x18] sm:$0xff] %vm222, %v782
    %803 = vst.msk [vmem:[#allocation11 + $0x20] sm:$0xff] %vm222, %v784
    %804 = vst.msk [vmem:[#allocation11 + $0x28] sm:$0xff] %vm222, %v786
    %805 = vst.msk [vmem:[#allocation11 + $0x30] sm:$0xff] %vm222, %v788
    %806 = vst.msk [vmem:[#allocation11 + $0x38] sm:$0xff] %vm222, %v790
    %807 = vst.msk [vmem:[%s7] sm:$0xff] %vm222, %v790
    %809 = vrot.lane.b32.xlu0 %v760, 96
    %v810 = vpop.permute.xlu0 %809
    %s812 = scalar_lea.vmem %s7, 8
    %813 = vst.msk [vmem:[%s812] sm:$0xff] %vm222, %v810
    // Predicated region
    $region46: #{lstm_detach_layer_forward.1} parent=1 // pred_check
      _
    $region47: #{lstm_detach_layer_forward.1} parent=1 // pred_check_branch
      %815 = sbr.rel (0) target = $region49
    $region48: #{lstm_detach_layer_forward.1} parent=1 // pred_region
      %s817 = ssub.s32 1024, 1024
      %818 = vsyncadd [#allocation4], %s817
      %s819 = sshll.u32 [#allocation11], 4
      %s820 = int_to_ptr.vmem [resolvable:$true] %s819
      %825 = dma.vmem_to_hbm [thread:$0]  %s820, 1024, %s6, [#allocation4], 128, 128, 8
    $region49: #{lstm_detach_layer_forward.1} parent=1 // pred_fallthru
      _
    // Predicated region
    $region50: #{lstm_detach_layer_forward.1} parent=1 // pred_check
      _
    $region51: #{lstm_detach_layer_forward.1} parent=1 // pred_check_branch
      %827 = sbr.rel (0) target = $region53
    $region52: #{lstm_detach_layer_forward.1} parent=1 // pred_region
      _
    $region53: #{lstm_detach_layer_forward.1} parent=1 // pred_fallthru
      _
    // Predicated region
    $region54: #{lstm_detach_layer_forward.1} parent=1 // pred_check
      _
    $region55: #{lstm_detach_layer_forward.1} parent=1 // pred_check_branch
      %829 = sbr.rel (0) target = $region57
    $region56: #{lstm_detach_layer_forward.1} parent=1 // pred_region
      %830 = dma.done [#allocation4], 1024
    $region57: #{lstm_detach_layer_forward.1} parent=1 // pred_fallthru
      _
    // Predicated region
    $region58: #{lstm_detach_layer_forward.1} parent=1 // pred_check
      _
    $region59: #{lstm_detach_layer_forward.1} parent=1 // pred_check_branch
      %832 = sbr.rel (0) target = $region61
    $region60: #{lstm_detach_layer_forward.1} parent=1 // pred_region
      _
    $region61: #{lstm_detach_layer_forward.1} parent=1 // pred_fallthru
      _
    %833 = vsyncpa [#allocation3], 1
    %834 = vsyncpa [#allocation6], 1
    %835 = vsyncpa [#allocation9], 1
    %836 = vsyncpa [#allocation4], 1

</llo_original>
